<compile_context>
chip_gen: v6e
topology: v6e:2x2x1
jax: 0.10.0
libtpu: 0.0.40
codegen_flags: <defaults>
</compile_context>

<pallas_src>
import jax
import jax.numpy as jnp
from jax.experimental import pallas as pl
from jax.experimental.pallas import tpu as pltpu

# Deterministic "parameters" from the module __init__ (registered buffer).
LEVELS = (-1.0, 1.0)
TEMPERATURE = 0.01  # unused in forward (kept for parity with the module)

_LANE = 1024            # lane-dense last dim (multiple of 128)
_MAX_TILE_ROWS = 1024   # 1024 x 1024 x 4 B = 4 MiB f32 per tile
_MIN_TILE_ROWS = 8      # sublane alignment for f32
_MIN_GRID_STEPS = 4     # keep >= 4 grid steps so v7x megacore + pipeline engage
_TINY_N = 65536         # below this, plain jnp beats pallas_call overhead
_VMEM_LIMIT = 32 << 20  # explicit scoped-VMEM request (OK on v5e/v6e/v7x)


def _quantize_jnp(x, levels):
    """Plain-JAX expression mirroring the PyTorch loop exactly."""
    levels = tuple(float(v) for v in levels)
    q = jnp.zeros_like(x)
    for i, level in enumerate(levels):
        if i == 0:
            mask = x <= (levels[0] + levels[1]) / 2.0
        else:
            mask = x > (levels[i - 1] + levels[i]) / 2.0
        q = jnp.where(mask, jnp.asarray(level, dtype=x.dtype), q)
    return q


def _make_quantizer_kernel(levels):
    """Build a kernel closure over the static level values (buffer)."""
    levels = tuple(float(v) for v in levels)

    def kernel(x_ref, o_ref):
        x = x_ref[...]
        # Exact PyTorch-loop semantics (sequential overwrite; NaN -> 0).
        q = jnp.zeros_like(x)
        for i, level in enumerate(levels):
            if i == 0:
                thresh = (levels[0] + levels[1]) / 2.0
                mask = x <= thresh
            else:
                thresh = (levels[i - 1] + levels[i]) / 2.0
                mask = x > thresh
            q = jnp.where(mask, jnp.float32(level), q)
        o_ref[...] = q.astype(o_ref.dtype)

    return kernel


def _run_kernel_2d(x2d, levels):
    """Run the quantizer kernel on a (rows, _LANE) f32 slab."""
    rows, lane = x2d.shape

    # Tile rows: multiple of 8, aim for >= _MIN_GRID_STEPS grid steps, cap so a
    # double-buffered in+out pair stays well under the 32 MiB VMEM request.
    tm = ((rows // _MIN_GRID_STEPS) // 8) * 8
    tm = max(_MIN_TILE_ROWS, min(_MAX_TILE_ROWS, tm))
    grid = (pl.cdiv(rows, tm),)   # last block may be partial (writes masked)

    n_elems = rows * lane
    bytes_per = jnp.dtype(x2d.dtype).itemsize

    return pl.pallas_call(
        _make_quantizer_kernel(levels),
        out_shape=jax.ShapeDtypeStruct((rows, lane), x2d.dtype),
        grid=grid,
        in_specs=[pl.BlockSpec((tm, lane), lambda i: (i, 0))],
        out_specs=pl.BlockSpec((tm, lane), lambda i: (i, 0)),
        compiler_params=pltpu.CompilerParams(
            dimension_semantics=("parallel",),
            vmem_limit_bytes=_VMEM_LIMIT,
        ),
        cost_estimate=pl.CostEstimate(
            flops=4 * n_elems,
            transcendentals=0,
            bytes_accessed=2 * bytes_per * n_elems,
        ),
    )(x2d)


def discrete_quantize(x, levels=LEVELS, hard=True):
    """Pallas implementation of DiscreteQuantizer.forward.

    x: array of any shape (e.g. (B, C, T)).  Returns same shape/dtype.
    `hard` is accepted for API parity; the reference forward ignores it.
    """
    orig_shape = x.shape
    n = int(x.size)
    if n == 0:
        return x

    # Tiny inputs / non-f32 dtypes: plain jnp (fuses into neighbours, avoids
    # fixed pallas_call overhead and f32 tiling assumptions).
    if n < _TINY_N or x.dtype != jnp.float32:
        return _quantize_jnp(x, levels)

    flat = x.reshape(-1)  # contiguous reshape: free

    if n % _LANE == 0:
        # Fast path: free bitcast to a lane-dense (rows, 1024) slab.
        out2d = _run_kernel_2d(flat.reshape(n // _LANE, _LANE), levels)
        return out2d.reshape(orig_shape)

    # Ragged path: kernel on the divisible bulk, tiny (<1024 elem) tail in jnp.
    bulk = (n // _LANE) * _LANE
    out_bulk = _run_kernel_2d(flat[:bulk].reshape(bulk // _LANE, _LANE),
                              levels).reshape(-1)
    out_tail = _quantize_jnp(flat[bulk:], levels)
    return jnp.concatenate([out_bulk, out_tail]).reshape(orig_shape)


def _reference(x, levels=LEVELS):
    return _quantize_jnp(x, levels)


if __name__ == "__main__":
    key = jax.random.PRNGKey(0)

    # Primary small shape consistent with a 1-D conditioned UNet: (B, C, T).
    # 128 elements -> exercises the tiny-input fallback path.
    B, C, T = 2, 4, 16
    x = jax.random.normal(key, (B, C, T), dtype=jnp.float32)
    x = x.at[0, 0, 0].set(jnp.nan)  # NaN must stay 0, as in the PyTorch loop
    out = jax.block_until_ready(discrete_quantize(x))
    assert out.shape == x.shape and out.dtype == x.dtype
    assert jnp.array_equal(out, _reference(x)), "tiny-path mismatch"
    finite = ~jnp.isnan(x)
    assert bool(jnp.all(jnp.where(finite, (out == -1.0) | (out == 1.0),
                                  out == 0.0)))

    # Larger shape: 4*8*20000 = 640000 elems, divisible by 1024 -> fast kernel
    # path with a partial last grid block (625 rows, 8-aligned tile rows).
    k1, k2 = jax.random.split(jax.random.PRNGKey(1))
    x2 = jax.random.normal(k1, (4, 8, 20000), dtype=jnp.float32)
    x2 = x2.at[1, 2, 3].set(jnp.nan)
    out2 = jax.block_until_ready(discrete_quantize(x2))
    assert jnp.array_equal(out2, _reference(x2)), "kernel-path mismatch"

    # Ragged size (not a multiple of 1024): kernel on the bulk + jnp tail.
    x3 = jax.random.normal(k2, (3, 5, 7001), dtype=jnp.float32)
    out3 = jax.block_until_ready(discrete_quantize(x3))
    assert jnp.array_equal(out3, _reference(x3)), "ragged-path mismatch"

    print("KERNEL_OK")
</pallas_src>

<mosaic_0001>
module attributes {stable_mosaic.version = 11 : i64} {
  func.func @kernel(%arg0: i32, %arg1: memref<152x1024xf32, #tpu.memory_space<vmem>>, %arg2: memref<152x1024xf32, #tpu.memory_space<vmem>>) attributes {dimension_semantics = [#tpu.dimension_semantics<parallel>], iteration_bounds = array<i64: 5>, scalar_prefetch = 0 : i64, scratch_operands = 0 : i64, tpu.core_type = #tpu.core_type<tc>, window_params = [{transform_indices = @transform_0, window_bounds = array<i64: 152, 1024>}, {transform_indices = @transform_1, window_bounds = array<i64: 152, 1024>}]} {
    %c0 = arith.constant 0 : index
    %c0_0 = arith.constant 0 : index
    %0 = vector.load %arg1[%c0, %c0_0] : memref<152x1024xf32, #tpu.memory_space<vmem>>, vector<152x1024xf32>
    %cst = arith.constant 0.000000e+00 : f32
    %1 = vector.broadcast %cst : f32 to vector<152x1024xf32>
    %cst_1 = arith.constant 0.000000e+00 : f32
    %2 = vector.broadcast %cst_1 : f32 to vector<152x1024xf32>
    %3 = arith.cmpf ole, %0, %2 : vector<152x1024xf32>
    %cst_2 = arith.constant -1.000000e+00 : f32
    %4 = vector.broadcast %cst_2 : f32 to vector<152x1024xf32>
    %5 = arith.select %3, %4, %1 : vector<152x1024xi1>, vector<152x1024xf32>
    %cst_3 = arith.constant 0.000000e+00 : f32
    %6 = vector.broadcast %cst_3 : f32 to vector<152x1024xf32>
    %7 = arith.cmpf ogt, %0, %6 : vector<152x1024xf32>
    %cst_4 = arith.constant 1.000000e+00 : f32
    %8 = vector.broadcast %cst_4 : f32 to vector<152x1024xf32>
    %9 = arith.select %7, %8, %5 : vector<152x1024xi1>, vector<152x1024xf32>
    %c0_5 = arith.constant 0 : index
    %c0_6 = arith.constant 0 : index
    %10 = vector.load %arg2[%c0_5, %c0_6] : memref<152x1024xf32, #tpu.memory_space<vmem>>, vector<152x1024xf32>
    tpu.vector_store %arg2[%c0_5, %c0_6], %9 {strides = array<i32>} : memref<152x1024xf32, #tpu.memory_space<vmem>>, vector<152x1024xf32>,
    return
  }
  func.func @transform_0(%arg0: i32) -> (i32, i32) {
    %c0_i32 = arith.constant 0 : i32
    %c0_i32_0 = arith.constant 0 : i32
    return %arg0, %c0_i32 : i32, i32
  }
  func.func @transform_1(%arg0: i32) -> (i32, i32) {
    %c0_i32 = arith.constant 0 : i32
    %c0_i32_0 = arith.constant 0 : i32
    return %arg0, %c0_i32 : i32, i32
  }
}

</mosaic_0001>

<llo_original>
// kernel: tpu_custom_call.1
$region0: #{tpu_custom_call.1}
  #allocation0 [shape = 'u32[]', space=smem, size = 0x4, offset = 0x4, fixed_abs, tag = 'smem constant byte address 0x4 - core index']
  #allocation1 [shape = 'u32[144,128]{1,0:T(1,128)}', space=vmem, size = 0x12000, scoped, tag = 'internal scratch']
  %s0 = inlined_call_operand.hbm [shape: f32[625,1024], index: 0, kind: input, shape index: {}]
  %s1 = inlined_call_operand.hbm [shape: f32[625,1024], index: 1, kind: output, shape index: {}]
  %s2 = sld [smem:[#allocation0]]
  $region41: #{tpu_custom_call.1} parent=0
    _
  %s4 = ssub.s32 1, %s2
  %s5 = scalar_select 0, %s4, %s2
  $region1: #{tpu_custom_call.1} parent=0
    #allocation2 [shape = 'u8[1245184]{0}', space=vmem, size = 0x130000, scoped, tag = 'input window, operand 0']
    #allocation3 [shape = 's32[2]{0}', space=sflag, size = 0x8, scoped, tag = 'scoped memory for tpu_custom_call.1']
    #allocation4 [shape = 's32[2]{0}', space=sflag, size = 0x8, scoped, tag = 'scoped memory for tpu_custom_call.1']
    #allocation5 [shape = 'u8[1245184]{0}', space=vmem, size = 0x130000, scoped, tag = 'output window, operand 0']
    %6 = vsyncpa [#allocation3], 0
    %s7 = scalar_lea.sflag [#allocation3], 1
    %8 = vsyncpa %s7, 0
    %9 = vsyncpa [#allocation4], 0
    %s10 = scalar_lea.sflag [#allocation4], 1
    %11 = vsyncpa %s10, 0
    loop: start=0, step=1, limit=7
    $region2: #{tpu_custom_call.1} parent=1 // loop_pre_header
      _
    $region3: #{tpu_custom_call.1} parent=1 // loop_header
      %s13 = sphi 0, %s17
      %p14 = scmp.ge.s32.totalorder %s13, 7
      %s23 = sphi 0, %s25
      %s26 = sphi 0, %s23
      %s27 = sphi 0, %s26
      %s43 = sphi 0, %s27
      %s49 = sphi 0, %s51
      %s52 = sphi 0, %s49
      %s53 = sphi 0, %s52
      %s69 = sphi 0, %s53
    $region4: #{tpu_custom_call.1} parent=1 // loop_header_branch
      %16 = sbr.rel (%p14) target = $region8
    $region5: #{tpu_custom_call.1} parent=1 // loop_body
      %s18 = ssub.s32 %s13, 1
      %s19 = ssub.s32 %s13, 2
      %s20 = sadd.s32 %s13, 1
      %s21 = ssub.s32 %s13, %s20
      %p22 = scmp.eq.s32.totalorder %s21, 0
      %s24 = sadd.s32 %s23, 1
      %s25 = scalar_select %p22, %s23, %s24
      %p28 = pneg %p22
      %p29 = scmp.eq.s32.totalorder %s13, 4
      %p30 = por %p28, %p29
      %p31 = scmp.ne.s32.totalorder %s23, %s26
      %p32 = scmp.eq.s32.totalorder %s13, 0
      %p33 = por %p31, %p32
      %p34 = scmp.ne.s32.totalorder %s23, %s26
      %p35 = scmp.eq.s32.totalorder %s18, 4
      %p36 = por %p34, %p35
      %p37 = scmp.ne.s32.totalorder %s26, %s27
      %p38 = scmp.eq.s32.totalorder %s18, 0
      %p39 = por %p37, %p38
      %p40 = scmp.ne.s32.totalorder %s26, %s27
      %p41 = scmp.eq.s32.totalorder %s19, 4
      %p42 = por %p40, %p41
      %p44 = scmp.ne.s32.totalorder %s27, %s43
      %p45 = scmp.eq.s32.totalorder %s19, 0
      %p46 = por %p44, %p45
      %s47 = ssub.s32 %s13, %s20
      %p48 = scmp.eq.s32.totalorder %s47, 0
      %s50 = sadd.s32 %s49, 1
      %s51 = scalar_select %p48, %s49, %s50
      %p54 = pneg %p48
      %p55 = scmp.eq.s32.totalorder %s13, 4
      %p56 = por %p54, %p55
      %p57 = scmp.ne.s32.totalorder %s49, %s52
      %p58 = scmp.eq.s32.totalorder %s13, 0
      %p59 = por %p57, %p58
      %p60 = scmp.ne.s32.totalorder %s49, %s52
      %p61 = scmp.eq.s32.totalorder %s18, 4
      %p62 = por %p60, %p61
      %p63 = scmp.ne.s32.totalorder %s52, %s53
      %p64 = scmp.eq.s32.totalorder %s18, 0
      %p65 = por %p63, %p64
      %p66 = scmp.ne.s32.totalorder %s52, %s53
      %p67 = scmp.eq.s32.totalorder %s19, 4
      %p68 = por %p66, %p67
      %p70 = scmp.ne.s32.totalorder %s53, %s69
      %p71 = scmp.eq.s32.totalorder %s19, 0
      %p72 = por %p70, %p71
      %p73 = scmp.le.s32.totalorder 1, %s13
      %p74 = scmp.lt.s32.totalorder %s13, 6
      %p75 = pnand %p73, %p74
      %p76 = pneg %p75
      // Predicated region
      $region9: #{tpu_custom_call.1} parent=5 // pred_check
        _
      $region10: #{tpu_custom_call.1} parent=5 // pred_check_branch
        %78 = sbr.rel (%p75) target = $region12
      $region11: #{tpu_custom_call.1} parent=5 // pred_region
        %s79 = ssub.s32 %s13, 1
      $region12: #{tpu_custom_call.1} parent=5 // pred_fallthru
        _
      %p80 = scmp.lt.s32.totalorder %s13, 5
      // Predicated region
      $region13: #{tpu_custom_call.1} parent=5 // pred_check
        %p81 = pneg %p80
      $region14: #{tpu_custom_call.1} parent=5 // pred_check_branch
        %83 = sbr.rel (%p81) target = $region16
      $region15: #{tpu_custom_call.1} parent=5 // pred_region
        // Predicated region
        $region17: #{tpu_custom_call.1} parent=15 // pred_check
          %p84 = pneg %p33
        $region18: #{tpu_custom_call.1} parent=15 // pred_check_branch
          %86 = sbr.rel (%p84) target = $region20
        $region19: #{tpu_custom_call.1} parent=15 // pred_region
          %s87 = sand.u32 %s23, 1
          %s88 = scalar_lea.sflag [#allocation3], %s87
          %s89 = sand.u32 %s23, 1
          %s90 = smul.addr %s89, 1216
          %s91 = scalar_lea.vmem [#allocation2], %s90
          %s92 = smul.u32 19, %s13
          %s93 = ssub.s32 79, %s92
          %p94 = scmp.lt.s32.totalorder %s93, 19
          %s95 = scalar_select %p94, %s93, 19
          %s96 = smul.u32 128, %s95
          %s97 = smul.u32 %s96, 8
          %s99 = ssub.s32 19456, %s97
          %100 = vsyncadd %s88, %s99
          %p101 = scmp.ne.s32.totalorder 0, %s97
          %s102 = smul.addr %s92, 8
          %s103 = smul.addr %s102, 128
          %s104 = scalar_lea.hbm %s0, %s103
          %s105 = smul.u32 64, %s95
          %s106 = sshll.u32 %s91, 4
          %s107 = int_to_ptr.vmem [resolvable:$true] %s106
          %s108 = sshll.u32 %s105, 4
          %112 = dma.hbm_to_vmem [thread:$0]  (%p101), %s104, %s108, %s107, %s88, 1024, 1024, 64
        $region20: #{tpu_custom_call.1} parent=15 // pred_fallthru
          _
      $region16: #{tpu_custom_call.1} parent=5 // pred_fallthru
        _
      %p113 = scmp.le.s32.totalorder 1, %s13
      %p114 = scmp.lt.s32.totalorder %s13, 6
      %p115 = pnand %p113, %p114
      %p116 = pneg %p115
      // Predicated region
      $region21: #{tpu_custom_call.1} parent=5 // pred_check
        _
      $region22: #{tpu_custom_call.1} parent=5 // pred_check_branch
        %118 = sbr.rel (%p115) target = $region24
      $region23: #{tpu_custom_call.1} parent=5 // pred_region
        %s119 = ssub.s32 %s13, 1
        %s120 = sand.u32 %s26, 1
        %s121 = scalar_lea.sflag [#allocation3], %s120
        %s122 = sand.u32 %s26, 1
        %s123 = smul.addr %s122, 1216
        %s124 = scalar_lea.vmem [#allocation2], %s123
        // Predicated region
        $region25: #{tpu_custom_call.1} parent=23 // pred_check
          %p125 = pneg %p39
        $region26: #{tpu_custom_call.1} parent=23 // pred_check_branch
          %127 = sbr.rel (%p125) target = $region28
        $region27: #{tpu_custom_call.1} parent=23 // pred_region
          %128 = dma.done %s121, 19456
        $region28: #{tpu_custom_call.1} parent=23 // pred_fallthru
          _
        %s129 = sand.u32 %s26, 1
        %s130 = scalar_lea.sflag [#allocation3], %s129
        %s131 = sand.u32 %s26, 1
        %s132 = smul.addr %s131, 1216
        %s133 = scalar_lea.vmem [#allocation2], %s132
        %p134 = pneg %p39
        %p135 = pneg %p36
        %p136 = pneg %p65
        %p137 = pneg %p62
        %s138 = sand.u32 %s52, 1
        %s139 = scalar_lea.sflag [#allocation4], %s138
        %s140 = sand.u32 %s52, 1
        %s141 = smul.addr %s140, 1216
        %s142 = scalar_lea.vmem [#allocation5], %s141
        %s143 = smul.u32 19, %s18
        %s144 = ssub.s32 79, %s143
        %p145 = scmp.lt.s32.totalorder %s144, 19
        %s146 = scalar_select %p145, %s144, 19
        %s147 = smul.u32 128, %s146
        %s148 = smul.u32 %s147, 8
        %s149 = smul.u32 19, %s18
        %s150 = ssub.s32 79, %s149
        %p151 = scmp.lt.s32.totalorder %s150, 19
        %s152 = scalar_select %p151, %s150, 19
        %s153 = smul.u32 128, %s152
        %s154 = smul.u32 %s153, 8
        %v155 = vld [vmem:[%s124] sm:$0xff]
        %v156 = vld [vmem:[%s124 + $0x8] sm:$0xff]
        %v157 = vld [vmem:[%s124 + $0x10] sm:$0xff]
        %v158 = vld [vmem:[%s124 + $0x18] sm:$0xff]
        %v159 = vld [vmem:[%s124 + $0x20] sm:$0xff]
        %v160 = vld [vmem:[%s124 + $0x28] sm:$0xff]
        %v161 = vld [vmem:[%s124 + $0x30] sm:$0xff]
        %v162 = vld [vmem:[%s124 + $0x38] sm:$0xff]
        %v163 = vld [vmem:[%s124 + $0x40] sm:$0xff]
        %v164 = vld [vmem:[%s124 + $0x48] sm:$0xff]
        %v165 = vld [vmem:[%s124 + $0x50] sm:$0xff]
        %v166 = vld [vmem:[%s124 + $0x58] sm:$0xff]
        %v167 = vld [vmem:[%s124 + $0x60] sm:$0xff]
        %v168 = vld [vmem:[%s124 + $0x68] sm:$0xff]
        %v169 = vld [vmem:[%s124 + $0x70] sm:$0xff]
        %v170 = vld [vmem:[%s124 + $0x78] sm:$0xff]
        %v171 = vld [vmem:[%s124 + $0x80] sm:$0xff]
        %v172 = vld [vmem:[%s124 + $0x88] sm:$0xff]
        %v173 = vld [vmem:[%s124 + $0x90] sm:$0xff]
        %v174 = vld [vmem:[%s124 + $0x98] sm:$0xff]
        %v175 = vld [vmem:[%s124 + $0xa0] sm:$0xff]
        %v176 = vld [vmem:[%s124 + $0xa8] sm:$0xff]
        %v177 = vld [vmem:[%s124 + $0xb0] sm:$0xff]
        %v178 = vld [vmem:[%s124 + $0xb8] sm:$0xff]
        %v179 = vld [vmem:[%s124 + $0xc0] sm:$0xff]
        %v180 = vld [vmem:[%s124 + $0xc8] sm:$0xff]
        %v181 = vld [vmem:[%s124 + $0xd0] sm:$0xff]
        %v182 = vld [vmem:[%s124 + $0xd8] sm:$0xff]
        %v183 = vld [vmem:[%s124 + $0xe0] sm:$0xff]
        %v184 = vld [vmem:[%s124 + $0xe8] sm:$0xff]
        %v185 = vld [vmem:[%s124 + $0xf0] sm:$0xff]
        %v186 = vld [vmem:[%s124 + $0xf8] sm:$0xff]
        %v187 = vld [vmem:[%s124 + $0x100] sm:$0xff]
        %v188 = vld [vmem:[%s124 + $0x108] sm:$0xff]
        %v189 = vld [vmem:[%s124 + $0x110] sm:$0xff]
        %v190 = vld [vmem:[%s124 + $0x118] sm:$0xff]
        %v191 = vld [vmem:[%s124 + $0x120] sm:$0xff]
        %v192 = vld [vmem:[%s124 + $0x128] sm:$0xff]
        %v193 = vld [vmem:[%s124 + $0x130] sm:$0xff]
        %v194 = vld [vmem:[%s124 + $0x138] sm:$0xff]
        %v195 = vld [vmem:[%s124 + $0x140] sm:$0xff]
        %v196 = vld [vmem:[%s124 + $0x148] sm:$0xff]
        %v197 = vld [vmem:[%s124 + $0x150] sm:$0xff]
        %v198 = vld [vmem:[%s124 + $0x158] sm:$0xff]
        %v199 = vld [vmem:[%s124 + $0x160] sm:$0xff]
        %v200 = vld [vmem:[%s124 + $0x168] sm:$0xff]
        %v201 = vld [vmem:[%s124 + $0x170] sm:$0xff]
        %v202 = vld [vmem:[%s124 + $0x178] sm:$0xff]
        %v203 = vld [vmem:[%s124 + $0x180] sm:$0xff]
        %v204 = vld [vmem:[%s124 + $0x188] sm:$0xff]
        %v205 = vld [vmem:[%s124 + $0x190] sm:$0xff]
        %v206 = vld [vmem:[%s124 + $0x198] sm:$0xff]
        %v207 = vld [vmem:[%s124 + $0x1a0] sm:$0xff]
        %v208 = vld [vmem:[%s124 + $0x1a8] sm:$0xff]
        %v209 = vld [vmem:[%s124 + $0x1b0] sm:$0xff]
        %v210 = vld [vmem:[%s124 + $0x1b8] sm:$0xff]
        %v211 = vld [vmem:[%s124 + $0x1c0] sm:$0xff]
        %v212 = vld [vmem:[%s124 + $0x1c8] sm:$0xff]
        %v213 = vld [vmem:[%s124 + $0x1d0] sm:$0xff]
        %v214 = vld [vmem:[%s124 + $0x1d8] sm:$0xff]
        %v215 = vld [vmem:[%s124 + $0x1e0] sm:$0xff]
        %v216 = vld [vmem:[%s124 + $0x1e8] sm:$0xff]
        %v217 = vld [vmem:[%s124 + $0x1f0] sm:$0xff]
        %v218 = vld [vmem:[%s124 + $0x1f8] sm:$0xff]
        %v219 = vld [vmem:[%s124 + $0x200] sm:$0xff]
        %v220 = vld [vmem:[%s124 + $0x208] sm:$0xff]
        %v221 = vld [vmem:[%s124 + $0x210] sm:$0xff]
        %v222 = vld [vmem:[%s124 + $0x218] sm:$0xff]
        %v223 = vld [vmem:[%s124 + $0x220] sm:$0xff]
        %v224 = vld [vmem:[%s124 + $0x228] sm:$0xff]
        %v225 = vld [vmem:[%s124 + $0x230] sm:$0xff]
        %v226 = vld [vmem:[%s124 + $0x238] sm:$0xff]
        %v227 = vld [vmem:[%s124 + $0x240] sm:$0xff]
        %v228 = vld [vmem:[%s124 + $0x248] sm:$0xff]
        %v229 = vld [vmem:[%s124 + $0x250] sm:$0xff]
        %v230 = vld [vmem:[%s124 + $0x258] sm:$0xff]
        %v231 = vld [vmem:[%s124 + $0x260] sm:$0xff]
        %v232 = vld [vmem:[%s124 + $0x268] sm:$0xff]
        %v233 = vld [vmem:[%s124 + $0x270] sm:$0xff]
        %v234 = vld [vmem:[%s124 + $0x278] sm:$0xff]
        %v235 = vld [vmem:[%s124 + $0x280] sm:$0xff]
        %v236 = vld [vmem:[%s124 + $0x288] sm:$0xff]
        %v237 = vld [vmem:[%s124 + $0x290] sm:$0xff]
        %v238 = vld [vmem:[%s124 + $0x298] sm:$0xff]
        %v239 = vld [vmem:[%s124 + $0x2a0] sm:$0xff]
        %v240 = vld [vmem:[%s124 + $0x2a8] sm:$0xff]
        %v241 = vld [vmem:[%s124 + $0x2b0] sm:$0xff]
        %v242 = vld [vmem:[%s124 + $0x2b8] sm:$0xff]
        %v243 = vld [vmem:[%s124 + $0x2c0] sm:$0xff]
        %v244 = vld [vmem:[%s124 + $0x2c8] sm:$0xff]
        %v245 = vld [vmem:[%s124 + $0x2d0] sm:$0xff]
        %v246 = vld [vmem:[%s124 + $0x2d8] sm:$0xff]
        %v247 = vld [vmem:[%s124 + $0x2e0] sm:$0xff]
        %v248 = vld [vmem:[%s124 + $0x2e8] sm:$0xff]
        %v249 = vld [vmem:[%s124 + $0x2f0] sm:$0xff]
        %v250 = vld [vmem:[%s124 + $0x2f8] sm:$0xff]
        %v251 = vld [vmem:[%s124 + $0x300] sm:$0xff]
        %v252 = vld [vmem:[%s124 + $0x308] sm:$0xff]
        %v253 = vld [vmem:[%s124 + $0x310] sm:$0xff]
        %v254 = vld [vmem:[%s124 + $0x318] sm:$0xff]
        %v255 = vld [vmem:[%s124 + $0x320] sm:$0xff]
        %v256 = vld [vmem:[%s124 + $0x328] sm:$0xff]
        %v257 = vld [vmem:[%s124 + $0x330] sm:$0xff]
        %v258 = vld [vmem:[%s124 + $0x338] sm:$0xff]
        %v259 = vld [vmem:[%s124 + $0x340] sm:$0xff]
        %v260 = vld [vmem:[%s124 + $0x348] sm:$0xff]
        %v261 = vld [vmem:[%s124 + $0x350] sm:$0xff]
        %v262 = vld [vmem:[%s124 + $0x358] sm:$0xff]
        %v263 = vld [vmem:[%s124 + $0x360] sm:$0xff]
        %v264 = vld [vmem:[%s124 + $0x368] sm:$0xff]
        %v265 = vld [vmem:[%s124 + $0x370] sm:$0xff]
        %v266 = vld [vmem:[%s124 + $0x378] sm:$0xff]
        %v267 = vld [vmem:[%s124 + $0x380] sm:$0xff]
        %v268 = vld [vmem:[%s124 + $0x388] sm:$0xff]
        %v269 = vld [vmem:[%s124 + $0x390] sm:$0xff]
        %v270 = vld [vmem:[%s124 + $0x398] sm:$0xff]
        %v271 = vld [vmem:[%s124 + $0x3a0] sm:$0xff]
        %v272 = vld [vmem:[%s124 + $0x3a8] sm:$0xff]
        %v273 = vld [vmem:[%s124 + $0x3b0] sm:$0xff]
        %v274 = vld [vmem:[%s124 + $0x3b8] sm:$0xff]
        %v275 = vld [vmem:[%s124 + $0x3c0] sm:$0xff]
        %v276 = vld [vmem:[%s124 + $0x3c8] sm:$0xff]
        %v277 = vld [vmem:[%s124 + $0x3d0] sm:$0xff]
        %v278 = vld [vmem:[%s124 + $0x3d8] sm:$0xff]
        %v279 = vld [vmem:[%s124 + $0x3e0] sm:$0xff]
        %v280 = vld [vmem:[%s124 + $0x3e8] sm:$0xff]
        %v281 = vld [vmem:[%s124 + $0x3f0] sm:$0xff]
        %v282 = vld [vmem:[%s124 + $0x3f8] sm:$0xff]
        %v283 = vld [vmem:[%s124 + $0x400] sm:$0xff]
        %v284 = vld [vmem:[%s124 + $0x408] sm:$0xff]
        %v285 = vld [vmem:[%s124 + $0x410] sm:$0xff]
        %v286 = vld [vmem:[%s124 + $0x418] sm:$0xff]
        %v287 = vld [vmem:[%s124 + $0x420] sm:$0xff]
        %v288 = vld [vmem:[%s124 + $0x428] sm:$0xff]
        %v289 = vld [vmem:[%s124 + $0x430] sm:$0xff]
        %v290 = vld [vmem:[%s124 + $0x438] sm:$0xff]
        %v291 = vld [vmem:[%s124 + $0x440] sm:$0xff]
        %v292 = vld [vmem:[%s124 + $0x448] sm:$0xff]
        %v293 = vld [vmem:[%s124 + $0x450] sm:$0xff]
        %v294 = vld [vmem:[%s124 + $0x458] sm:$0xff]
        %v295 = vld [vmem:[%s124 + $0x460] sm:$0xff]
        %v296 = vld [vmem:[%s124 + $0x468] sm:$0xff]
        %v297 = vld [vmem:[%s124 + $0x470] sm:$0xff]
        %v298 = vld [vmem:[%s124 + $0x478] sm:$0xff]
        %v299 = vld [vmem:[%s124 + $0x480] sm:$0xff]
        %v300 = vld [vmem:[%s124 + $0x488] sm:$0xff]
        %v301 = vld [vmem:[%s124 + $0x490] sm:$0xff]
        %v302 = vld [vmem:[%s124 + $0x498] sm:$0xff]
        %v303 = vld [vmem:[%s124 + $0x4a0] sm:$0xff]
        %v304 = vld [vmem:[%s124 + $0x4a8] sm:$0xff]
        %v305 = vld [vmem:[%s124 + $0x4b0] sm:$0xff]
        %v306 = vld [vmem:[%s124 + $0x4b8] sm:$0xff]
        %vm307 = vcmp.le.f32.partialorder %v155, 0.0
        %vm308 = vcmp.le.f32.partialorder %v156, 0.0
        %vm309 = vcmp.le.f32.partialorder %v157, 0.0
        %vm310 = vcmp.le.f32.partialorder %v158, 0.0
        %vm311 = vcmp.le.f32.partialorder %v159, 0.0
        %vm312 = vcmp.le.f32.partialorder %v160, 0.0
        %vm313 = vcmp.le.f32.partialorder %v161, 0.0
        %vm314 = vcmp.le.f32.partialorder %v162, 0.0
        %vm315 = vcmp.le.f32.partialorder %v163, 0.0
        %vm316 = vcmp.le.f32.partialorder %v164, 0.0
        %vm317 = vcmp.le.f32.partialorder %v165, 0.0
        %vm318 = vcmp.le.f32.partialorder %v166, 0.0
        %vm319 = vcmp.le.f32.partialorder %v167, 0.0
        %vm320 = vcmp.le.f32.partialorder %v168, 0.0
        %vm321 = vcmp.le.f32.partialorder %v169, 0.0
        %vm322 = vcmp.le.f32.partialorder %v170, 0.0
        %vm323 = vcmp.le.f32.partialorder %v171, 0.0
        %vm324 = vcmp.le.f32.partialorder %v172, 0.0
        %vm325 = vcmp.le.f32.partialorder %v173, 0.0
        %vm326 = vcmp.le.f32.partialorder %v174, 0.0
        %vm327 = vcmp.le.f32.partialorder %v175, 0.0
        %vm328 = vcmp.le.f32.partialorder %v176, 0.0
        %vm329 = vcmp.le.f32.partialorder %v177, 0.0
        %vm330 = vcmp.le.f32.partialorder %v178, 0.0
        %vm331 = vcmp.le.f32.partialorder %v179, 0.0
        %vm332 = vcmp.le.f32.partialorder %v180, 0.0
        %vm333 = vcmp.le.f32.partialorder %v181, 0.0
        %vm334 = vcmp.le.f32.partialorder %v182, 0.0
        %vm335 = vcmp.le.f32.partialorder %v183, 0.0
        %vm336 = vcmp.le.f32.partialorder %v184, 0.0
        %vm337 = vcmp.le.f32.partialorder %v185, 0.0
        %vm338 = vcmp.le.f32.partialorder %v186, 0.0
        %vm339 = vcmp.le.f32.partialorder %v187, 0.0
        %vm340 = vcmp.le.f32.partialorder %v188, 0.0
        %vm341 = vcmp.le.f32.partialorder %v189, 0.0
        %vm342 = vcmp.le.f32.partialorder %v190, 0.0
        %vm343 = vcmp.le.f32.partialorder %v191, 0.0
        %vm344 = vcmp.le.f32.partialorder %v192, 0.0
        %vm345 = vcmp.le.f32.partialorder %v193, 0.0
        %vm346 = vcmp.le.f32.partialorder %v194, 0.0
        %vm347 = vcmp.le.f32.partialorder %v195, 0.0
        %vm348 = vcmp.le.f32.partialorder %v196, 0.0
        %vm349 = vcmp.le.f32.partialorder %v197, 0.0
        %vm350 = vcmp.le.f32.partialorder %v198, 0.0
        %vm351 = vcmp.le.f32.partialorder %v199, 0.0
        %vm352 = vcmp.le.f32.partialorder %v200, 0.0
        %vm353 = vcmp.le.f32.partialorder %v201, 0.0
        %vm354 = vcmp.le.f32.partialorder %v202, 0.0
        %vm355 = vcmp.le.f32.partialorder %v203, 0.0
        %vm356 = vcmp.le.f32.partialorder %v204, 0.0
        %vm357 = vcmp.le.f32.partialorder %v205, 0.0
        %vm358 = vcmp.le.f32.partialorder %v206, 0.0
        %vm359 = vcmp.le.f32.partialorder %v207, 0.0
        %vm360 = vcmp.le.f32.partialorder %v208, 0.0
        %vm361 = vcmp.le.f32.partialorder %v209, 0.0
        %vm362 = vcmp.le.f32.partialorder %v210, 0.0
        %vm363 = vcmp.le.f32.partialorder %v211, 0.0
        %vm364 = vcmp.le.f32.partialorder %v212, 0.0
        %vm365 = vcmp.le.f32.partialorder %v213, 0.0
        %vm366 = vcmp.le.f32.partialorder %v214, 0.0
        %vm367 = vcmp.le.f32.partialorder %v215, 0.0
        %vm368 = vcmp.le.f32.partialorder %v216, 0.0
        %vm369 = vcmp.le.f32.partialorder %v217, 0.0
        %vm370 = vcmp.le.f32.partialorder %v218, 0.0
        %vm371 = vcmp.le.f32.partialorder %v219, 0.0
        %vm372 = vcmp.le.f32.partialorder %v220, 0.0
        %vm373 = vcmp.le.f32.partialorder %v221, 0.0
        %vm374 = vcmp.le.f32.partialorder %v222, 0.0
        %vm375 = vcmp.le.f32.partialorder %v223, 0.0
        %vm376 = vcmp.le.f32.partialorder %v224, 0.0
        %vm377 = vcmp.le.f32.partialorder %v225, 0.0
        %vm378 = vcmp.le.f32.partialorder %v226, 0.0
        %vm379 = vcmp.le.f32.partialorder %v227, 0.0
        %vm380 = vcmp.le.f32.partialorder %v228, 0.0
        %vm381 = vcmp.le.f32.partialorder %v229, 0.0
        %vm382 = vcmp.le.f32.partialorder %v230, 0.0
        %vm383 = vcmp.le.f32.partialorder %v231, 0.0
        %vm384 = vcmp.le.f32.partialorder %v232, 0.0
        %vm385 = vcmp.le.f32.partialorder %v233, 0.0
        %vm386 = vcmp.le.f32.partialorder %v234, 0.0
        %vm387 = vcmp.le.f32.partialorder %v235, 0.0
        %vm388 = vcmp.le.f32.partialorder %v236, 0.0
        %vm389 = vcmp.le.f32.partialorder %v237, 0.0
        %vm390 = vcmp.le.f32.partialorder %v238, 0.0
        %vm391 = vcmp.le.f32.partialorder %v239, 0.0
        %vm392 = vcmp.le.f32.partialorder %v240, 0.0
        %vm393 = vcmp.le.f32.partialorder %v241, 0.0
        %vm394 = vcmp.le.f32.partialorder %v242, 0.0
        %vm395 = vcmp.le.f32.partialorder %v243, 0.0
        %vm396 = vcmp.le.f32.partialorder %v244, 0.0
        %vm397 = vcmp.le.f32.partialorder %v245, 0.0
        %vm398 = vcmp.le.f32.partialorder %v246, 0.0
        %vm399 = vcmp.le.f32.partialorder %v247, 0.0
        %vm400 = vcmp.le.f32.partialorder %v248, 0.0
        %vm401 = vcmp.le.f32.partialorder %v249, 0.0
        %vm402 = vcmp.le.f32.partialorder %v250, 0.0
        %vm403 = vcmp.le.f32.partialorder %v251, 0.0
        %vm404 = vcmp.le.f32.partialorder %v252, 0.0
        %vm405 = vcmp.le.f32.partialorder %v253, 0.0
        %vm406 = vcmp.le.f32.partialorder %v254, 0.0
        %vm407 = vcmp.le.f32.partialorder %v255, 0.0
        %vm408 = vcmp.le.f32.partialorder %v256, 0.0
        %vm409 = vcmp.le.f32.partialorder %v257, 0.0
        %vm410 = vcmp.le.f32.partialorder %v258, 0.0
        %vm411 = vcmp.le.f32.partialorder %v259, 0.0
        %vm412 = vcmp.le.f32.partialorder %v260, 0.0
        %vm413 = vcmp.le.f32.partialorder %v261, 0.0
        %vm414 = vcmp.le.f32.partialorder %v262, 0.0
        %vm415 = vcmp.le.f32.partialorder %v263, 0.0
        %vm416 = vcmp.le.f32.partialorder %v264, 0.0
        %vm417 = vcmp.le.f32.partialorder %v265, 0.0
        %vm418 = vcmp.le.f32.partialorder %v266, 0.0
        %vm419 = vcmp.le.f32.partialorder %v267, 0.0
        %vm420 = vcmp.le.f32.partialorder %v268, 0.0
        %vm421 = vcmp.le.f32.partialorder %v269, 0.0
        %vm422 = vcmp.le.f32.partialorder %v270, 0.0
        %vm423 = vcmp.le.f32.partialorder %v271, 0.0
        %vm424 = vcmp.le.f32.partialorder %v272, 0.0
        %vm425 = vcmp.le.f32.partialorder %v273, 0.0
        %vm426 = vcmp.le.f32.partialorder %v274, 0.0
        %vm427 = vcmp.le.f32.partialorder %v275, 0.0
        %vm428 = vcmp.le.f32.partialorder %v276, 0.0
        %vm429 = vcmp.le.f32.partialorder %v277, 0.0
        %vm430 = vcmp.le.f32.partialorder %v278, 0.0
        %vm431 = vcmp.le.f32.partialorder %v279, 0.0
        %vm432 = vcmp.le.f32.partialorder %v280, 0.0
        %vm433 = vcmp.le.f32.partialorder %v281, 0.0
        %vm434 = vcmp.le.f32.partialorder %v282, 0.0
        %vm435 = vcmp.le.f32.partialorder %v283, 0.0
        %vm436 = vcmp.le.f32.partialorder %v284, 0.0
        %vm437 = vcmp.le.f32.partialorder %v285, 0.0
        %vm438 = vcmp.le.f32.partialorder %v286, 0.0
        %vm439 = vcmp.le.f32.partialorder %v287, 0.0
        %vm440 = vcmp.le.f32.partialorder %v288, 0.0
        %vm441 = vcmp.le.f32.partialorder %v289, 0.0
        %vm442 = vcmp.le.f32.partialorder %v290, 0.0
        %vm443 = vcmp.le.f32.partialorder %v291, 0.0
        %vm444 = vcmp.le.f32.partialorder %v292, 0.0
        %vm445 = vcmp.le.f32.partialorder %v293, 0.0
        %vm446 = vcmp.le.f32.partialorder %v294, 0.0
        %vm447 = vcmp.le.f32.partialorder %v295, 0.0
        %vm448 = vcmp.le.f32.partialorder %v296, 0.0
        %vm449 = vcmp.le.f32.partialorder %v297, 0.0
        %vm450 = vcmp.le.f32.partialorder %v298, 0.0
        %vm451 = vcmp.le.f32.partialorder %v299, 0.0
        %vm452 = vcmp.le.f32.partialorder %v300, 0.0
        %vm453 = vcmp.le.f32.partialorder %v301, 0.0
        %vm454 = vcmp.le.f32.partialorder %v302, 0.0
        %vm455 = vcmp.le.f32.partialorder %v303, 0.0
        %vm456 = vcmp.le.f32.partialorder %v304, 0.0
        %vm457 = vcmp.le.f32.partialorder %v305, 0.0
        %vm458 = vcmp.le.f32.partialorder %v306, 0.0
        %v459 = vsel %vm307, -1.0, 0.0
        %v460 = vsel %vm308, -1.0, 0.0
        %v461 = vsel %vm309, -1.0, 0.0
        %v462 = vsel %vm310, -1.0, 0.0
        %v463 = vsel %vm311, -1.0, 0.0
        %v464 = vsel %vm312, -1.0, 0.0
        %v465 = vsel %vm313, -1.0, 0.0
        %v466 = vsel %vm314, -1.0, 0.0
        %v467 = vsel %vm315, -1.0, 0.0
        %v468 = vsel %vm316, -1.0, 0.0
        %v469 = vsel %vm317, -1.0, 0.0
        %v470 = vsel %vm318, -1.0, 0.0
        %v471 = vsel %vm319, -1.0, 0.0
        %v472 = vsel %vm320, -1.0, 0.0
        %v473 = vsel %vm321, -1.0, 0.0
        %v474 = vsel %vm322, -1.0, 0.0
        %v475 = vsel %vm323, -1.0, 0.0
        %v476 = vsel %vm324, -1.0, 0.0
        %v477 = vsel %vm325, -1.0, 0.0
        %v478 = vsel %vm326, -1.0, 0.0
        %v479 = vsel %vm327, -1.0, 0.0
        %v480 = vsel %vm328, -1.0, 0.0
        %v481 = vsel %vm329, -1.0, 0.0
        %v482 = vsel %vm330, -1.0, 0.0
        %v483 = vsel %vm331, -1.0, 0.0
        %v484 = vsel %vm332, -1.0, 0.0
        %v485 = vsel %vm333, -1.0, 0.0
        %v486 = vsel %vm334, -1.0, 0.0
        %v487 = vsel %vm335, -1.0, 0.0
        %v488 = vsel %vm336, -1.0, 0.0
        %v489 = vsel %vm337, -1.0, 0.0
        %v490 = vsel %vm338, -1.0, 0.0
        %v491 = vsel %vm339, -1.0, 0.0
        %v492 = vsel %vm340, -1.0, 0.0
        %v493 = vsel %vm341, -1.0, 0.0
        %v494 = vsel %vm342, -1.0, 0.0
        %v495 = vsel %vm343, -1.0, 0.0
        %v496 = vsel %vm344, -1.0, 0.0
        %v497 = vsel %vm345, -1.0, 0.0
        %v498 = vsel %vm346, -1.0, 0.0
        %v499 = vsel %vm347, -1.0, 0.0
        %v500 = vsel %vm348, -1.0, 0.0
        %v501 = vsel %vm349, -1.0, 0.0
        %v502 = vsel %vm350, -1.0, 0.0
        %v503 = vsel %vm351, -1.0, 0.0
        %v504 = vsel %vm352, -1.0, 0.0
        %v505 = vsel %vm353, -1.0, 0.0
        %v506 = vsel %vm354, -1.0, 0.0
        %v507 = vsel %vm355, -1.0, 0.0
        %v508 = vsel %vm356, -1.0, 0.0
        %v509 = vsel %vm357, -1.0, 0.0
        %v510 = vsel %vm358, -1.0, 0.0
        %v511 = vsel %vm359, -1.0, 0.0
        %v512 = vsel %vm360, -1.0, 0.0
        %v513 = vsel %vm361, -1.0, 0.0
        %v514 = vsel %vm362, -1.0, 0.0
        %v515 = vsel %vm363, -1.0, 0.0
        %v516 = vsel %vm364, -1.0, 0.0
        %v517 = vsel %vm365, -1.0, 0.0
        %v518 = vsel %vm366, -1.0, 0.0
        %v519 = vsel %vm367, -1.0, 0.0
        %v520 = vsel %vm368, -1.0, 0.0
        %v521 = vsel %vm369, -1.0, 0.0
        %v522 = vsel %vm370, -1.0, 0.0
        %v523 = vsel %vm371, -1.0, 0.0
        %v524 = vsel %vm372, -1.0, 0.0
        %v525 = vsel %vm373, -1.0, 0.0
        %v526 = vsel %vm374, -1.0, 0.0
        %v527 = vsel %vm375, -1.0, 0.0
        %v528 = vsel %vm376, -1.0, 0.0
        %v529 = vsel %vm377, -1.0, 0.0
        %v530 = vsel %vm378, -1.0, 0.0
        %v531 = vsel %vm379, -1.0, 0.0
        %v532 = vsel %vm380, -1.0, 0.0
        %v533 = vsel %vm381, -1.0, 0.0
        %v534 = vsel %vm382, -1.0, 0.0
        %v535 = vsel %vm383, -1.0, 0.0
        %v536 = vsel %vm384, -1.0, 0.0
        %v537 = vsel %vm385, -1.0, 0.0
        %v538 = vsel %vm386, -1.0, 0.0
        %v539 = vsel %vm387, -1.0, 0.0
        %v540 = vsel %vm388, -1.0, 0.0
        %v541 = vsel %vm389, -1.0, 0.0
        %v542 = vsel %vm390, -1.0, 0.0
        %v543 = vsel %vm391, -1.0, 0.0
        %v544 = vsel %vm392, -1.0, 0.0
        %v545 = vsel %vm393, -1.0, 0.0
        %v546 = vsel %vm394, -1.0, 0.0
        %v547 = vsel %vm395, -1.0, 0.0
        %v548 = vsel %vm396, -1.0, 0.0
        %v549 = vsel %vm397, -1.0, 0.0
        %v550 = vsel %vm398, -1.0, 0.0
        %v551 = vsel %vm399, -1.0, 0.0
        %v552 = vsel %vm400, -1.0, 0.0
        %v553 = vsel %vm401, -1.0, 0.0
        %v554 = vsel %vm402, -1.0, 0.0
        %v555 = vsel %vm403, -1.0, 0.0
        %v556 = vsel %vm404, -1.0, 0.0
        %v557 = vsel %vm405, -1.0, 0.0
        %v558 = vsel %vm406, -1.0, 0.0
        %v559 = vsel %vm407, -1.0, 0.0
        %v560 = vsel %vm408, -1.0, 0.0
        %v561 = vsel %vm409, -1.0, 0.0
        %v562 = vsel %vm410, -1.0, 0.0
        %v563 = vsel %vm411, -1.0, 0.0
        %v564 = vsel %vm412, -1.0, 0.0
        %v565 = vsel %vm413, -1.0, 0.0
        %v566 = vsel %vm414, -1.0, 0.0
        %v567 = vsel %vm415, -1.0, 0.0
        %v568 = vsel %vm416, -1.0, 0.0
        %v569 = vsel %vm417, -1.0, 0.0
        %v570 = vsel %vm418, -1.0, 0.0
        %v571 = vsel %vm419, -1.0, 0.0
        %v572 = vsel %vm420, -1.0, 0.0
        %v573 = vsel %vm421, -1.0, 0.0
        %v574 = vsel %vm422, -1.0, 0.0
        %v575 = vsel %vm423, -1.0, 0.0
        %v576 = vsel %vm424, -1.0, 0.0
        %v577 = vsel %vm425, -1.0, 0.0
        %v578 = vsel %vm426, -1.0, 0.0
        %v579 = vsel %vm427, -1.0, 0.0
        %v580 = vsel %vm428, -1.0, 0.0
        %v581 = vsel %vm429, -1.0, 0.0
        %v582 = vsel %vm430, -1.0, 0.0
        %v583 = vsel %vm431, -1.0, 0.0
        %v584 = vsel %vm432, -1.0, 0.0
        %v585 = vsel %vm433, -1.0, 0.0
        %v586 = vsel %vm434, -1.0, 0.0
        %v587 = vsel %vm435, -1.0, 0.0
        %v588 = vsel %vm436, -1.0, 0.0
        %v589 = vsel %vm437, -1.0, 0.0
        %v590 = vsel %vm438, -1.0, 0.0
        %v591 = vsel %vm439, -1.0, 0.0
        %v592 = vsel %vm440, -1.0, 0.0
        %v593 = vsel %vm441, -1.0, 0.0
        %v594 = vsel %vm442, -1.0, 0.0
        %v595 = vsel %vm443, -1.0, 0.0
        %v596 = vsel %vm444, -1.0, 0.0
        %v597 = vsel %vm445, -1.0, 0.0
        %v598 = vsel %vm446, -1.0, 0.0
        %v599 = vsel %vm447, -1.0, 0.0
        %v600 = vsel %vm448, -1.0, 0.0
        %v601 = vsel %vm449, -1.0, 0.0
        %v602 = vsel %vm450, -1.0, 0.0
        %v603 = vsel %vm451, -1.0, 0.0
        %v604 = vsel %vm452, -1.0, 0.0
        %v605 = vsel %vm453, -1.0, 0.0
        %v606 = vsel %vm454, -1.0, 0.0
        %v607 = vsel %vm455, -1.0, 0.0
        %v608 = vsel %vm456, -1.0, 0.0
        %v609 = vsel %vm457, -1.0, 0.0
        %v610 = vsel %vm458, -1.0, 0.0
        %vm611 = vcmp.gt.f32.partialorder %v155, 0.0
        %vm612 = vcmp.gt.f32.partialorder %v156, 0.0
        %vm613 = vcmp.gt.f32.partialorder %v157, 0.0
        %vm614 = vcmp.gt.f32.partialorder %v158, 0.0
        %vm615 = vcmp.gt.f32.partialorder %v159, 0.0
        %vm616 = vcmp.gt.f32.partialorder %v160, 0.0
        %vm617 = vcmp.gt.f32.partialorder %v161, 0.0
        %vm618 = vcmp.gt.f32.partialorder %v162, 0.0
        %vm619 = vcmp.gt.f32.partialorder %v163, 0.0
        %vm620 = vcmp.gt.f32.partialorder %v164, 0.0
        %vm621 = vcmp.gt.f32.partialorder %v165, 0.0
        %vm622 = vcmp.gt.f32.partialorder %v166, 0.0
        %vm623 = vcmp.gt.f32.partialorder %v167, 0.0
        %vm624 = vcmp.gt.f32.partialorder %v168, 0.0
        %vm625 = vcmp.gt.f32.partialorder %v169, 0.0
        %vm626 = vcmp.gt.f32.partialorder %v170, 0.0
        %vm627 = vcmp.gt.f32.partialorder %v171, 0.0
        %vm628 = vcmp.gt.f32.partialorder %v172, 0.0
        %vm629 = vcmp.gt.f32.partialorder %v173, 0.0
        %vm630 = vcmp.gt.f32.partialorder %v174, 0.0
        %vm631 = vcmp.gt.f32.partialorder %v175, 0.0
        %vm632 = vcmp.gt.f32.partialorder %v176, 0.0
        %vm633 = vcmp.gt.f32.partialorder %v177, 0.0
        %vm634 = vcmp.gt.f32.partialorder %v178, 0.0
        %vm635 = vcmp.gt.f32.partialorder %v179, 0.0
        %vm636 = vcmp.gt.f32.partialorder %v180, 0.0
        %vm637 = vcmp.gt.f32.partialorder %v181, 0.0
        %vm638 = vcmp.gt.f32.partialorder %v182, 0.0
        %vm639 = vcmp.gt.f32.partialorder %v183, 0.0
        %vm640 = vcmp.gt.f32.partialorder %v184, 0.0
        %vm641 = vcmp.gt.f32.partialorder %v185, 0.0
        %vm642 = vcmp.gt.f32.partialorder %v186, 0.0
        %vm643 = vcmp.gt.f32.partialorder %v187, 0.0
        %vm644 = vcmp.gt.f32.partialorder %v188, 0.0
        %vm645 = vcmp.gt.f32.partialorder %v189, 0.0
        %vm646 = vcmp.gt.f32.partialorder %v190, 0.0
        %vm647 = vcmp.gt.f32.partialorder %v191, 0.0
        %vm648 = vcmp.gt.f32.partialorder %v192, 0.0
        %vm649 = vcmp.gt.f32.partialorder %v193, 0.0
        %vm650 = vcmp.gt.f32.partialorder %v194, 0.0
        %vm651 = vcmp.gt.f32.partialorder %v195, 0.0
        %vm652 = vcmp.gt.f32.partialorder %v196, 0.0
        %vm653 = vcmp.gt.f32.partialorder %v197, 0.0
        %vm654 = vcmp.gt.f32.partialorder %v198, 0.0
        %vm655 = vcmp.gt.f32.partialorder %v199, 0.0
        %vm656 = vcmp.gt.f32.partialorder %v200, 0.0
        %vm657 = vcmp.gt.f32.partialorder %v201, 0.0
        %vm658 = vcmp.gt.f32.partialorder %v202, 0.0
        %vm659 = vcmp.gt.f32.partialorder %v203, 0.0
        %vm660 = vcmp.gt.f32.partialorder %v204, 0.0
        %vm661 = vcmp.gt.f32.partialorder %v205, 0.0
        %vm662 = vcmp.gt.f32.partialorder %v206, 0.0
        %vm663 = vcmp.gt.f32.partialorder %v207, 0.0
        %vm664 = vcmp.gt.f32.partialorder %v208, 0.0
        %vm665 = vcmp.gt.f32.partialorder %v209, 0.0
        %vm666 = vcmp.gt.f32.partialorder %v210, 0.0
        %vm667 = vcmp.gt.f32.partialorder %v211, 0.0
        %vm668 = vcmp.gt.f32.partialorder %v212, 0.0
        %vm669 = vcmp.gt.f32.partialorder %v213, 0.0
        %vm670 = vcmp.gt.f32.partialorder %v214, 0.0
        %vm671 = vcmp.gt.f32.partialorder %v215, 0.0
        %vm672 = vcmp.gt.f32.partialorder %v216, 0.0
        %vm673 = vcmp.gt.f32.partialorder %v217, 0.0
        %vm674 = vcmp.gt.f32.partialorder %v218, 0.0
        %vm675 = vcmp.gt.f32.partialorder %v219, 0.0
        %vm676 = vcmp.gt.f32.partialorder %v220, 0.0
        %vm677 = vcmp.gt.f32.partialorder %v221, 0.0
        %vm678 = vcmp.gt.f32.partialorder %v222, 0.0
        %vm679 = vcmp.gt.f32.partialorder %v223, 0.0
        %vm680 = vcmp.gt.f32.partialorder %v224, 0.0
        %vm681 = vcmp.gt.f32.partialorder %v225, 0.0
        %vm682 = vcmp.gt.f32.partialorder %v226, 0.0
        %vm683 = vcmp.gt.f32.partialorder %v227, 0.0
        %vm684 = vcmp.gt.f32.partialorder %v228, 0.0
        %vm685 = vcmp.gt.f32.partialorder %v229, 0.0
        %vm686 = vcmp.gt.f32.partialorder %v230, 0.0
        %vm687 = vcmp.gt.f32.partialorder %v231, 0.0
        %vm688 = vcmp.gt.f32.partialorder %v232, 0.0
        %vm689 = vcmp.gt.f32.partialorder %v233, 0.0
        %vm690 = vcmp.gt.f32.partialorder %v234, 0.0
        %vm691 = vcmp.gt.f32.partialorder %v235, 0.0
        %vm692 = vcmp.gt.f32.partialorder %v236, 0.0
        %vm693 = vcmp.gt.f32.partialorder %v237, 0.0
        %vm694 = vcmp.gt.f32.partialorder %v238, 0.0
        %vm695 = vcmp.gt.f32.partialorder %v239, 0.0
        %vm696 = vcmp.gt.f32.partialorder %v240, 0.0
        %vm697 = vcmp.gt.f32.partialorder %v241, 0.0
        %vm698 = vcmp.gt.f32.partialorder %v242, 0.0
        %vm699 = vcmp.gt.f32.partialorder %v243, 0.0
        %vm700 = vcmp.gt.f32.partialorder %v244, 0.0
        %vm701 = vcmp.gt.f32.partialorder %v245, 0.0
        %vm702 = vcmp.gt.f32.partialorder %v246, 0.0
        %vm703 = vcmp.gt.f32.partialorder %v247, 0.0
        %vm704 = vcmp.gt.f32.partialorder %v248, 0.0
        %vm705 = vcmp.gt.f32.partialorder %v249, 0.0
        %vm706 = vcmp.gt.f32.partialorder %v250, 0.0
        %vm707 = vcmp.gt.f32.partialorder %v251, 0.0
        %vm708 = vcmp.gt.f32.partialorder %v252, 0.0
        %vm709 = vcmp.gt.f32.partialorder %v253, 0.0
        %vm710 = vcmp.gt.f32.partialorder %v254, 0.0
        %vm711 = vcmp.gt.f32.partialorder %v255, 0.0
        %vm712 = vcmp.gt.f32.partialorder %v256, 0.0
        %vm713 = vcmp.gt.f32.partialorder %v257, 0.0
        %vm714 = vcmp.gt.f32.partialorder %v258, 0.0
        %vm715 = vcmp.gt.f32.partialorder %v259, 0.0
        %vm716 = vcmp.gt.f32.partialorder %v260, 0.0
        %vm717 = vcmp.gt.f32.partialorder %v261, 0.0
        %vm718 = vcmp.gt.f32.partialorder %v262, 0.0
        %vm719 = vcmp.gt.f32.partialorder %v263, 0.0
        %vm720 = vcmp.gt.f32.partialorder %v264, 0.0
        %vm721 = vcmp.gt.f32.partialorder %v265, 0.0
        %vm722 = vcmp.gt.f32.partialorder %v266, 0.0
        %vm723 = vcmp.gt.f32.partialorder %v267, 0.0
        %vm724 = vcmp.gt.f32.partialorder %v268, 0.0
        %vm725 = vcmp.gt.f32.partialorder %v269, 0.0
        %vm726 = vcmp.gt.f32.partialorder %v270, 0.0
        %vm727 = vcmp.gt.f32.partialorder %v271, 0.0
        %vm728 = vcmp.gt.f32.partialorder %v272, 0.0
        %vm729 = vcmp.gt.f32.partialorder %v273, 0.0
        %vm730 = vcmp.gt.f32.partialorder %v274, 0.0
        %vm731 = vcmp.gt.f32.partialorder %v275, 0.0
        %vm732 = vcmp.gt.f32.partialorder %v276, 0.0
        %vm733 = vcmp.gt.f32.partialorder %v277, 0.0
        %vm734 = vcmp.gt.f32.partialorder %v278, 0.0
        %vm735 = vcmp.gt.f32.partialorder %v279, 0.0
        %vm736 = vcmp.gt.f32.partialorder %v280, 0.0
        %vm737 = vcmp.gt.f32.partialorder %v281, 0.0
        %vm738 = vcmp.gt.f32.partialorder %v282, 0.0
        %vm739 = vcmp.gt.f32.partialorder %v283, 0.0
        %vm740 = vcmp.gt.f32.partialorder %v284, 0.0
        %vm741 = vcmp.gt.f32.partialorder %v285, 0.0
        %vm742 = vcmp.gt.f32.partialorder %v286, 0.0
        %vm743 = vcmp.gt.f32.partialorder %v287, 0.0
        %vm744 = vcmp.gt.f32.partialorder %v288, 0.0
        %vm745 = vcmp.gt.f32.partialorder %v289, 0.0
        %vm746 = vcmp.gt.f32.partialorder %v290, 0.0
        %vm747 = vcmp.gt.f32.partialorder %v291, 0.0
        %vm748 = vcmp.gt.f32.partialorder %v292, 0.0
        %vm749 = vcmp.gt.f32.partialorder %v293, 0.0
        %vm750 = vcmp.gt.f32.partialorder %v294, 0.0
        %vm751 = vcmp.gt.f32.partialorder %v295, 0.0
        %vm752 = vcmp.gt.f32.partialorder %v296, 0.0
        %vm753 = vcmp.gt.f32.partialorder %v297, 0.0
        %vm754 = vcmp.gt.f32.partialorder %v298, 0.0
        %vm755 = vcmp.gt.f32.partialorder %v299, 0.0
        %vm756 = vcmp.gt.f32.partialorder %v300, 0.0
        %vm757 = vcmp.gt.f32.partialorder %v301, 0.0
        %vm758 = vcmp.gt.f32.partialorder %v302, 0.0
        %vm759 = vcmp.gt.f32.partialorder %v303, 0.0
        %vm760 = vcmp.gt.f32.partialorder %v304, 0.0
        %vm761 = vcmp.gt.f32.partialorder %v305, 0.0
        %vm762 = vcmp.gt.f32.partialorder %v306, 0.0
        %v763 = vsel %vm611, 1.0, %v459
        %v764 = vsel %vm612, 1.0, %v460
        %v765 = vsel %vm613, 1.0, %v461
        %v766 = vsel %vm614, 1.0, %v462
        %v767 = vsel %vm615, 1.0, %v463
        %v768 = vsel %vm616, 1.0, %v464
        %v769 = vsel %vm617, 1.0, %v465
        %v770 = vsel %vm618, 1.0, %v466
        %v771 = vsel %vm619, 1.0, %v467
        %v772 = vsel %vm620, 1.0, %v468
        %v773 = vsel %vm621, 1.0, %v469
        %v774 = vsel %vm622, 1.0, %v470
        %v775 = vsel %vm623, 1.0, %v471
        %v776 = vsel %vm624, 1.0, %v472
        %v777 = vsel %vm625, 1.0, %v473
        %v778 = vsel %vm626, 1.0, %v474
        %v779 = vsel %vm627, 1.0, %v475
        %v780 = vsel %vm628, 1.0, %v476
        %v781 = vsel %vm629, 1.0, %v477
        %v782 = vsel %vm630, 1.0, %v478
        %v783 = vsel %vm631, 1.0, %v479
        %v784 = vsel %vm632, 1.0, %v480
        %v785 = vsel %vm633, 1.0, %v481
        %v786 = vsel %vm634, 1.0, %v482
        %v787 = vsel %vm635, 1.0, %v483
        %v788 = vsel %vm636, 1.0, %v484
        %v789 = vsel %vm637, 1.0, %v485
        %v790 = vsel %vm638, 1.0, %v486
        %v791 = vsel %vm639, 1.0, %v487
        %v792 = vsel %vm640, 1.0, %v488
        %v793 = vsel %vm641, 1.0, %v489
        %v794 = vsel %vm642, 1.0, %v490
        %v795 = vsel %vm643, 1.0, %v491
        %v796 = vsel %vm644, 1.0, %v492
        %v797 = vsel %vm645, 1.0, %v493
        %v798 = vsel %vm646, 1.0, %v494
        %v799 = vsel %vm647, 1.0, %v495
        %v800 = vsel %vm648, 1.0, %v496
        %v801 = vsel %vm649, 1.0, %v497
        %v802 = vsel %vm650, 1.0, %v498
        %v803 = vsel %vm651, 1.0, %v499
        %v804 = vsel %vm652, 1.0, %v500
        %v805 = vsel %vm653, 1.0, %v501
        %v806 = vsel %vm654, 1.0, %v502
        %v807 = vsel %vm655, 1.0, %v503
        %v808 = vsel %vm656, 1.0, %v504
        %v809 = vsel %vm657, 1.0, %v505
        %v810 = vsel %vm658, 1.0, %v506
        %v811 = vsel %vm659, 1.0, %v507
        %v812 = vsel %vm660, 1.0, %v508
        %v813 = vsel %vm661, 1.0, %v509
        %v814 = vsel %vm662, 1.0, %v510
        %v815 = vsel %vm663, 1.0, %v511
        %v816 = vsel %vm664, 1.0, %v512
        %v817 = vsel %vm665, 1.0, %v513
        %v818 = vsel %vm666, 1.0, %v514
        %v819 = vsel %vm667, 1.0, %v515
        %v820 = vsel %vm668, 1.0, %v516
        %v821 = vsel %vm669, 1.0, %v517
        %v822 = vsel %vm670, 1.0, %v518
        %v823 = vsel %vm671, 1.0, %v519
        %v824 = vsel %vm672, 1.0, %v520
        %v825 = vsel %vm673, 1.0, %v521
        %v826 = vsel %vm674, 1.0, %v522
        %v827 = vsel %vm675, 1.0, %v523
        %v828 = vsel %vm676, 1.0, %v524
        %v829 = vsel %vm677, 1.0, %v525
        %v830 = vsel %vm678, 1.0, %v526
        %v831 = vsel %vm679, 1.0, %v527
        %v832 = vsel %vm680, 1.0, %v528
        %v833 = vsel %vm681, 1.0, %v529
        %v834 = vsel %vm682, 1.0, %v530
        %v835 = vsel %vm683, 1.0, %v531
        %v836 = vsel %vm684, 1.0, %v532
        %v837 = vsel %vm685, 1.0, %v533
        %v838 = vsel %vm686, 1.0, %v534
        %v839 = vsel %vm687, 1.0, %v535
        %v840 = vsel %vm688, 1.0, %v536
        %v841 = vsel %vm689, 1.0, %v537
        %v842 = vsel %vm690, 1.0, %v538
        %v843 = vsel %vm691, 1.0, %v539
        %v844 = vsel %vm692, 1.0, %v540
        %v845 = vsel %vm693, 1.0, %v541
        %v846 = vsel %vm694, 1.0, %v542
        %v847 = vsel %vm695, 1.0, %v543
        %v848 = vsel %vm696, 1.0, %v544
        %v849 = vsel %vm697, 1.0, %v545
        %v850 = vsel %vm698, 1.0, %v546
        %v851 = vsel %vm699, 1.0, %v547
        %v852 = vsel %vm700, 1.0, %v548
        %v853 = vsel %vm701, 1.0, %v549
        %v854 = vsel %vm702, 1.0, %v550
        %v855 = vsel %vm703, 1.0, %v551
        %v856 = vsel %vm704, 1.0, %v552
        %v857 = vsel %vm705, 1.0, %v553
        %v858 = vsel %vm706, 1.0, %v554
        %v859 = vsel %vm707, 1.0, %v555
        %v860 = vsel %vm708, 1.0, %v556
        %v861 = vsel %vm709, 1.0, %v557
        %v862 = vsel %vm710, 1.0, %v558
        %v863 = vsel %vm711, 1.0, %v559
        %v864 = vsel %vm712, 1.0, %v560
        %v865 = vsel %vm713, 1.0, %v561
        %v866 = vsel %vm714, 1.0, %v562
        %v867 = vsel %vm715, 1.0, %v563
        %v868 = vsel %vm716, 1.0, %v564
        %v869 = vsel %vm717, 1.0, %v565
        %v870 = vsel %vm718, 1.0, %v566
        %v871 = vsel %vm719, 1.0, %v567
        %v872 = vsel %vm720, 1.0, %v568
        %v873 = vsel %vm721, 1.0, %v569
        %v874 = vsel %vm722, 1.0, %v570
        %v875 = vsel %vm723, 1.0, %v571
        %v876 = vsel %vm724, 1.0, %v572
        %v877 = vsel %vm725, 1.0, %v573
        %v878 = vsel %vm726, 1.0, %v574
        %v879 = vsel %vm727, 1.0, %v575
        %v880 = vsel %vm728, 1.0, %v576
        %v881 = vsel %vm729, 1.0, %v577
        %v882 = vsel %vm730, 1.0, %v578
        %v883 = vsel %vm731, 1.0, %v579
        %v884 = vsel %vm732, 1.0, %v580
        %v885 = vsel %vm733, 1.0, %v581
        %v886 = vsel %vm734, 1.0, %v582
        %v887 = vsel %vm735, 1.0, %v583
        %v888 = vsel %vm736, 1.0, %v584
        %v889 = vsel %vm737, 1.0, %v585
        %v890 = vsel %vm738, 1.0, %v586
        %v891 = vsel %vm739, 1.0, %v587
        %v892 = vsel %vm740, 1.0, %v588
        %v893 = vsel %vm741, 1.0, %v589
        %v894 = vsel %vm742, 1.0, %v590
        %v895 = vsel %vm743, 1.0, %v591
        %v896 = vsel %vm744, 1.0, %v592
        %v897 = vsel %vm745, 1.0, %v593
        %v898 = vsel %vm746, 1.0, %v594
        %v899 = vsel %vm747, 1.0, %v595
        %v900 = vsel %vm748, 1.0, %v596
        %v901 = vsel %vm749, 1.0, %v597
        %v902 = vsel %vm750, 1.0, %v598
        %v903 = vsel %vm751, 1.0, %v599
        %v904 = vsel %vm752, 1.0, %v600
        %v905 = vsel %vm753, 1.0, %v601
        %v906 = vsel %vm754, 1.0, %v602
        %v907 = vsel %vm755, 1.0, %v603
        %v908 = vsel %vm756, 1.0, %v604
        %v909 = vsel %vm757, 1.0, %v605
        %v910 = vsel %vm758, 1.0, %v606
        %v911 = vsel %vm759, 1.0, %v607
        %v912 = vsel %vm760, 1.0, %v608
        %v913 = vsel %vm761, 1.0, %v609
        %v914 = vsel %vm762, 1.0, %v610
        %915 = vst [vmem:[%s142] sm:$0xff] %v763
        %916 = vst [vmem:[%s142 + $0x8] sm:$0xff] %v764
        %917 = vst [vmem:[%s142 + $0x10] sm:$0xff] %v765
        %918 = vst [vmem:[%s142 + $0x18] sm:$0xff] %v766
        %919 = vst [vmem:[%s142 + $0x20] sm:$0xff] %v767
        %920 = vst [vmem:[%s142 + $0x28] sm:$0xff] %v768
        %921 = vst [vmem:[%s142 + $0x30] sm:$0xff] %v769
        %922 = vst [vmem:[%s142 + $0x38] sm:$0xff] %v770
        %923 = vst [vmem:[%s142 + $0x40] sm:$0xff] %v771
        %924 = vst [vmem:[%s142 + $0x48] sm:$0xff] %v772
        %925 = vst [vmem:[%s142 + $0x50] sm:$0xff] %v773
        %926 = vst [vmem:[%s142 + $0x58] sm:$0xff] %v774
        %927 = vst [vmem:[%s142 + $0x60] sm:$0xff] %v775
        %928 = vst [vmem:[%s142 + $0x68] sm:$0xff] %v776
        %929 = vst [vmem:[%s142 + $0x70] sm:$0xff] %v777
        %930 = vst [vmem:[%s142 + $0x78] sm:$0xff] %v778
        %931 = vst [vmem:[%s142 + $0x80] sm:$0xff] %v779
        %932 = vst [vmem:[%s142 + $0x88] sm:$0xff] %v780
        %933 = vst [vmem:[%s142 + $0x90] sm:$0xff] %v781
        %934 = vst [vmem:[%s142 + $0x98] sm:$0xff] %v782
        %935 = vst [vmem:[%s142 + $0xa0] sm:$0xff] %v783
        %936 = vst [vmem:[%s142 + $0xa8] sm:$0xff] %v784
        %937 = vst [vmem:[%s142 + $0xb0] sm:$0xff] %v785
        %938 = vst [vmem:[%s142 + $0xb8] sm:$0xff] %v786
        %939 = vst [vmem:[%s142 + $0xc0] sm:$0xff] %v787
        %940 = vst [vmem:[%s142 + $0xc8] sm:$0xff] %v788
        %941 = vst [vmem:[%s142 + $0xd0] sm:$0xff] %v789
        %942 = vst [vmem:[%s142 + $0xd8] sm:$0xff] %v790
        %943 = vst [vmem:[%s142 + $0xe0] sm:$0xff] %v791
        %944 = vst [vmem:[%s142 + $0xe8] sm:$0xff] %v792
        %945 = vst [vmem:[%s142 + $0xf0] sm:$0xff] %v793
        %946 = vst [vmem:[%s142 + $0xf8] sm:$0xff] %v794
        %947 = vst [vmem:[%s142 + $0x100] sm:$0xff] %v795
        %948 = vst [vmem:[%s142 + $0x108] sm:$0xff] %v796
        %949 = vst [vmem:[%s142 + $0x110] sm:$0xff] %v797
        %950 = vst [vmem:[%s142 + $0x118] sm:$0xff] %v798
        %951 = vst [vmem:[%s142 + $0x120] sm:$0xff] %v799
        %952 = vst [vmem:[%s142 + $0x128] sm:$0xff] %v800
        %953 = vst [vmem:[%s142 + $0x130] sm:$0xff] %v801
        %954 = vst [vmem:[%s142 + $0x138] sm:$0xff] %v802
        %955 = vst [vmem:[%s142 + $0x140] sm:$0xff] %v803
        %956 = vst [vmem:[%s142 + $0x148] sm:$0xff] %v804
        %957 = vst [vmem:[%s142 + $0x150] sm:$0xff] %v805
        %958 = vst [vmem:[%s142 + $0x158] sm:$0xff] %v806
        %959 = vst [vmem:[%s142 + $0x160] sm:$0xff] %v807
        %960 = vst [vmem:[%s142 + $0x168] sm:$0xff] %v808
        %961 = vst [vmem:[%s142 + $0x170] sm:$0xff] %v809
        %962 = vst [vmem:[%s142 + $0x178] sm:$0xff] %v810
        %963 = vst [vmem:[%s142 + $0x180] sm:$0xff] %v811
        %964 = vst [vmem:[%s142 + $0x188] sm:$0xff] %v812
        %965 = vst [vmem:[%s142 + $0x190] sm:$0xff] %v813
        %966 = vst [vmem:[%s142 + $0x198] sm:$0xff] %v814
        %967 = vst [vmem:[%s142 + $0x1a0] sm:$0xff] %v815
        %968 = vst [vmem:[%s142 + $0x1a8] sm:$0xff] %v816
        %969 = vst [vmem:[%s142 + $0x1b0] sm:$0xff] %v817
        %970 = vst [vmem:[%s142 + $0x1b8] sm:$0xff] %v818
        %971 = vst [vmem:[%s142 + $0x1c0] sm:$0xff] %v819
        %972 = vst [vmem:[%s142 + $0x1c8] sm:$0xff] %v820
        %973 = vst [vmem:[%s142 + $0x1d0] sm:$0xff] %v821
        %974 = vst [vmem:[%s142 + $0x1d8] sm:$0xff] %v822
        %975 = vst [vmem:[%s142 + $0x1e0] sm:$0xff] %v823
        %976 = vst [vmem:[%s142 + $0x1e8] sm:$0xff] %v824
        %977 = vst [vmem:[%s142 + $0x1f0] sm:$0xff] %v825
        %978 = vst [vmem:[%s142 + $0x1f8] sm:$0xff] %v826
        %979 = vst [vmem:[%s142 + $0x200] sm:$0xff] %v827
        %980 = vst [vmem:[%s142 + $0x208] sm:$0xff] %v828
        %981 = vst [vmem:[%s142 + $0x210] sm:$0xff] %v829
        %982 = vst [vmem:[%s142 + $0x218] sm:$0xff] %v830
        %983 = vst [vmem:[%s142 + $0x220] sm:$0xff] %v831
        %984 = vst [vmem:[%s142 + $0x228] sm:$0xff] %v832
        %985 = vst [vmem:[%s142 + $0x230] sm:$0xff] %v833
        %986 = vst [vmem:[%s142 + $0x238] sm:$0xff] %v834
        %987 = vst [vmem:[%s142 + $0x240] sm:$0xff] %v835
        %988 = vst [vmem:[%s142 + $0x248] sm:$0xff] %v836
        %989 = vst [vmem:[%s142 + $0x250] sm:$0xff] %v837
        %990 = vst [vmem:[%s142 + $0x258] sm:$0xff] %v838
        %991 = vst [vmem:[%s142 + $0x260] sm:$0xff] %v839
        %992 = vst [vmem:[%s142 + $0x268] sm:$0xff] %v840
        %993 = vst [vmem:[%s142 + $0x270] sm:$0xff] %v841
        %994 = vst [vmem:[%s142 + $0x278] sm:$0xff] %v842
        %995 = vst [vmem:[%s142 + $0x280] sm:$0xff] %v843
        %996 = vst [vmem:[%s142 + $0x288] sm:$0xff] %v844
        %997 = vst [vmem:[%s142 + $0x290] sm:$0xff] %v845
        %998 = vst [vmem:[%s142 + $0x298] sm:$0xff] %v846
        %999 = vst [vmem:[%s142 + $0x2a0] sm:$0xff] %v847
        %1000 = vst [vmem:[%s142 + $0x2a8] sm:$0xff] %v848
        %1001 = vst [vmem:[%s142 + $0x2b0] sm:$0xff] %v849
        %1002 = vst [vmem:[%s142 + $0x2b8] sm:$0xff] %v850
        %1003 = vst [vmem:[%s142 + $0x2c0] sm:$0xff] %v851
        %1004 = vst [vmem:[%s142 + $0x2c8] sm:$0xff] %v852
        %1005 = vst [vmem:[%s142 + $0x2d0] sm:$0xff] %v853
        %1006 = vst [vmem:[%s142 + $0x2d8] sm:$0xff] %v854
        %1007 = vst [vmem:[%s142 + $0x2e0] sm:$0xff] %v855
        %1008 = vst [vmem:[%s142 + $0x2e8] sm:$0xff] %v856
        %1009 = vst [vmem:[%s142 + $0x2f0] sm:$0xff] %v857
        %1010 = vst [vmem:[%s142 + $0x2f8] sm:$0xff] %v858
        %1011 = vst [vmem:[%s142 + $0x300] sm:$0xff] %v859
        %1012 = vst [vmem:[%s142 + $0x308] sm:$0xff] %v860
        %1013 = vst [vmem:[%s142 + $0x310] sm:$0xff] %v861
        %1014 = vst [vmem:[%s142 + $0x318] sm:$0xff] %v862
        %1015 = vst [vmem:[%s142 + $0x320] sm:$0xff] %v863
        %1016 = vst [vmem:[%s142 + $0x328] sm:$0xff] %v864
        %1017 = vst [vmem:[%s142 + $0x330] sm:$0xff] %v865
        %1018 = vst [vmem:[%s142 + $0x338] sm:$0xff] %v866
        %1019 = vst [vmem:[%s142 + $0x340] sm:$0xff] %v867
        %1020 = vst [vmem:[%s142 + $0x348] sm:$0xff] %v868
        %1021 = vst [vmem:[%s142 + $0x350] sm:$0xff] %v869
        %1022 = vst [vmem:[%s142 + $0x358] sm:$0xff] %v870
        %1023 = vst [vmem:[%s142 + $0x360] sm:$0xff] %v871
        %1024 = vst [vmem:[%s142 + $0x368] sm:$0xff] %v872
        %1025 = vst [vmem:[%s142 + $0x370] sm:$0xff] %v873
        %1026 = vst [vmem:[%s142 + $0x378] sm:$0xff] %v874
        %1027 = vst [vmem:[%s142 + $0x380] sm:$0xff] %v875
        %1028 = vst [vmem:[%s142 + $0x388] sm:$0xff] %v876
        %1029 = vst [vmem:[%s142 + $0x390] sm:$0xff] %v877
        %1030 = vst [vmem:[%s142 + $0x398] sm:$0xff] %v878
        %1031 = vst [vmem:[%s142 + $0x3a0] sm:$0xff] %v879
        %1032 = vst [vmem:[%s142 + $0x3a8] sm:$0xff] %v880
        %1033 = vst [vmem:[%s142 + $0x3b0] sm:$0xff] %v881
        %1034 = vst [vmem:[%s142 + $0x3b8] sm:$0xff] %v882
        %1035 = vst [vmem:[%s142 + $0x3c0] sm:$0xff] %v883
        %1036 = vst [vmem:[%s142 + $0x3c8] sm:$0xff] %v884
        %1037 = vst [vmem:[%s142 + $0x3d0] sm:$0xff] %v885
        %1038 = vst [vmem:[%s142 + $0x3d8] sm:$0xff] %v886
        %1039 = vst [vmem:[%s142 + $0x3e0] sm:$0xff] %v887
        %1040 = vst [vmem:[%s142 + $0x3e8] sm:$0xff] %v888
        %1041 = vst [vmem:[%s142 + $0x3f0] sm:$0xff] %v889
        %1042 = vst [vmem:[%s142 + $0x3f8] sm:$0xff] %v890
        %1043 = vst [vmem:[%s142 + $0x400] sm:$0xff] %v891
        %1044 = vst [vmem:[%s142 + $0x408] sm:$0xff] %v892
        %1045 = vst [vmem:[%s142 + $0x410] sm:$0xff] %v893
        %1046 = vst [vmem:[%s142 + $0x418] sm:$0xff] %v894
        %1047 = vst [vmem:[%s142 + $0x420] sm:$0xff] %v895
        %1048 = vst [vmem:[%s142 + $0x428] sm:$0xff] %v896
        %1049 = vst [vmem:[%s142 + $0x430] sm:$0xff] %v897
        %1050 = vst [vmem:[%s142 + $0x438] sm:$0xff] %v898
        %1051 = vst [vmem:[%s142 + $0x440] sm:$0xff] %v899
        %1052 = vst [vmem:[%s142 + $0x448] sm:$0xff] %v900
        %1053 = vst [vmem:[%s142 + $0x450] sm:$0xff] %v901
        %1054 = vst [vmem:[%s142 + $0x458] sm:$0xff] %v902
        %1055 = vst [vmem:[%s142 + $0x460] sm:$0xff] %v903
        %1056 = vst [vmem:[%s142 + $0x468] sm:$0xff] %v904
        %1057 = vst [vmem:[%s142 + $0x470] sm:$0xff] %v905
        %1058 = vst [vmem:[%s142 + $0x478] sm:$0xff] %v906
        %1059 = vst [vmem:[%s142 + $0x480] sm:$0xff] %v907
        %1060 = vst [vmem:[%s142 + $0x488] sm:$0xff] %v908
        %1061 = vst [vmem:[%s142 + $0x490] sm:$0xff] %v909
        %1062 = vst [vmem:[%s142 + $0x498] sm:$0xff] %v910
        %1063 = vst [vmem:[%s142 + $0x4a0] sm:$0xff] %v911
        %1064 = vst [vmem:[%s142 + $0x4a8] sm:$0xff] %v912
        %1065 = vst [vmem:[%s142 + $0x4b0] sm:$0xff] %v913
        %1066 = vst [vmem:[%s142 + $0x4b8] sm:$0xff] %v914
        %s1067 = sand.u32 %s52, 1
        %s1068 = scalar_lea.sflag [#allocation4], %s1067
        %s1069 = sand.u32 %s52, 1
        %s1070 = smul.addr %s1069, 1216
        %s1071 = scalar_lea.vmem [#allocation5], %s1070
        // Predicated region
        $region29: #{tpu_custom_call.1} parent=23 // pred_check
          %p1072 = pneg %p62
        $region30: #{tpu_custom_call.1} parent=23 // pred_check_branch
          %1074 = sbr.rel (%p1072) target = $region32
        $region31: #{tpu_custom_call.1} parent=23 // pred_region
          %s1075 = smul.u32 19, %s18
          %s1076 = ssub.s32 79, %s1075
          %p1077 = scmp.lt.s32.totalorder %s1076, 19
          %s1078 = scalar_select %p1077, %s1076, 19
          %s1079 = smul.u32 128, %s1078
          %s1080 = smul.u32 %s1079, 8
          %s1082 = ssub.s32 19456, %s1080
          %1083 = vsyncadd %s1068, %s1082
          %p1084 = scmp.ne.s32.totalorder 0, %s1080
          %s1085 = smul.addr %s1075, 8
          %s1086 = smul.addr %s1085, 128
          %s1087 = scalar_lea.hbm %s1, %s1086
          %s1088 = smul.u32 64, %s1078
          %s1089 = sshll.u32 %s1071, 4
          %s1090 = int_to_ptr.vmem [resolvable:$true] %s1089
          %s1091 = sshll.u32 %s1088, 4
          %1095 = dma.vmem_to_hbm [thread:$0]  (%p1084), %s1090, %s1091, %s1087, %s1068, 1024, 1024, 64
        $region32: #{tpu_custom_call.1} parent=23 // pred_fallthru
          _
      $region24: #{tpu_custom_call.1} parent=5 // pred_fallthru
        _
      %p1096 = scmp.le.s32.totalorder 2, %s13
      // Predicated region
      $region33: #{tpu_custom_call.1} parent=5 // pred_check
        %p1097 = pneg %p1096
      $region34: #{tpu_custom_call.1} parent=5 // pred_check_branch
        %1099 = sbr.rel (%p1097) target = $region36
      $region35: #{tpu_custom_call.1} parent=5 // pred_region
        %s1100 = ssub.s32 %s13, 2
        // Predicated region
        $region37: #{tpu_custom_call.1} parent=35 // pred_check
          %p1101 = pneg %p68
        $region38: #{tpu_custom_call.1} parent=35 // pred_check_branch
          %1103 = sbr.rel (%p1101) target = $region40
        $region39: #{tpu_custom_call.1} parent=35 // pred_region
          %s1104 = sand.u32 %s53, 1
          %s1105 = scalar_lea.sflag [#allocation4], %s1104
          %s1106 = sand.u32 %s53, 1
          %s1107 = smul.addr %s1106, 1216
          %s1108 = scalar_lea.vmem [#allocation5], %s1107
          %1109 = dma.done %s1105, 19456
        $region40: #{tpu_custom_call.1} parent=35 // pred_fallthru
          _
      $region36: #{tpu_custom_call.1} parent=5 // pred_fallthru
        _
    $region6: #{tpu_custom_call.1} parent=1 // loop_footer
      %s17 = sadd.s32 1, %s13
    $region7: #{tpu_custom_call.1} parent=1 // loop_footer_branch
      %12 = sbr.rel target = $region3
    $region8: #{tpu_custom_call.1} parent=1 // loop_exit
      _
    %1110 = vsyncpa [#allocation3], 1
    %s1111 = scalar_lea.sflag [#allocation3], 1
    %1112 = vsyncpa %s1111, 1
    %1113 = vsyncpa [#allocation4], 1
    %s1114 = scalar_lea.sflag [#allocation4], 1
    %1115 = vsyncpa %s1114, 1

</llo_original>
